<compile_context>
chip_gen: v6e
topology: v6e:2x2x1
jax: 0.10.0
libtpu: 0.0.40
codegen_flags: <defaults>
</compile_context>

<pallas_src>
import functools

import jax
import jax.numpy as jnp
from jax import lax
from jax.experimental import pallas as pl
from jax.experimental.pallas import tpu as pltpu


def _round_up(x, m):
    return (x + m - 1) // m * m


def _text_cls_kernel(tb, seq_len, inv_len,
                     ids_ref, emb_ref, w_ref, b_ref, out_ref, acc_ref):
    """Refs:
      ids_ref : SMEM (B_pad*L,) int32   -- scalar prefetch (flattened token ids)
      emb_ref : VMEM (V, D)             -- resident embedding table
      w_ref   : VMEM (D, C_pad) f32     -- classifier weight (transposed, padded)
      b_ref   : VMEM (1, C_pad) f32     -- classifier bias (padded)
      out_ref : VMEM (TB, C_pad) f32    -- logits for this batch tile
      acc_ref : VMEM (TB, D) f32        -- mean-pooled embeddings for this tile
    """
    d = emb_ref.shape[1]
    base = pl.program_id(0) * (tb * seq_len)

    def row_body(r, carry):
        row_base = base + r * seq_len

        # Sum the L embedding rows of this batch row in f32 registers.
        def tok_body(t, s):
            tok = ids_ref[row_base + t]                      # scalar from SMEM
            return s + emb_ref[pl.ds(tok, 1), :].astype(jnp.float32)

        s = lax.fori_loop(0, seq_len, tok_body,
                          jnp.zeros((1, d), jnp.float32))
        # Mean pool (divide by full padded length, matching torch.mean(dim=1)).
        acc_ref[pl.ds(r, 1), :] = s * inv_len
        return carry

    lax.fori_loop(0, tb, row_body, 0)

    # Batched classifier head: one (TB, D) @ (D, C_pad) MXU matmul + bias,
    # stored as a lane-dense (TB, 128) unmasked vst.
    out_ref[...] = (jnp.dot(acc_ref[...], w_ref[...],
                            preferred_element_type=jnp.float32)
                    + b_ref[...])


def text_classification_forward(ids, emb_table, fc_weight, fc_bias, *,
                                batch_tile=None):
    """ids: (B, L) int; emb_table: (V, D); fc_weight: (C, D); fc_bias: (C,)."""
    B, L = ids.shape
    V, D = emb_table.shape
    C = fc_weight.shape[0]
    C_pad = _round_up(max(C, 128), 128)        # lane-dense output width

    # Batch tile: multiple of 8 sublanes; larger tiles amortize the head matmul.
    if batch_tile is None:
        batch_tile = min(256, _round_up(B, 8))
    TB = batch_tile
    B_pad = _round_up(B, TB)

    # Glue: int32 ids, clipped (the in-kernel gather must stay in range),
    # padded batch rows use token 0 and are sliced away afterwards.
    ids = jnp.clip(ids.astype(jnp.int32), 0, V - 1)
    if B_pad != B:
        ids = jnp.concatenate(
            [ids, jnp.zeros((B_pad - B, L), jnp.int32)], axis=0)
    ids_flat = ids.reshape(B_pad * L)          # 1-D -> cheap SMEM padding

    # Classifier params stay f32 (no downcast to the embedding dtype).
    w_pad = jnp.zeros((D, C_pad), jnp.float32).at[:, :C].set(
        fc_weight.T.astype(jnp.float32))
    b_pad = jnp.zeros((1, C_pad), jnp.float32).at[0, :C].set(
        fc_bias.astype(jnp.float32))

    kernel = functools.partial(_text_cls_kernel, TB, L, 1.0 / L)

    grid_spec = pltpu.PrefetchScalarGridSpec(
        num_scalar_prefetch=1,                 # ids_flat -> SMEM
        grid=(B_pad // TB,),
        in_specs=[
            # Full embedding table resident in VMEM (constant block index).
            pl.BlockSpec((V, D), lambda i, ids_ref: (0, 0)),
            # Small classifier weight / bias, also resident.
            pl.BlockSpec((D, C_pad), lambda i, ids_ref: (0, 0)),
            pl.BlockSpec((1, C_pad), lambda i, ids_ref: (0, 0)),
        ],
        out_specs=pl.BlockSpec((TB, C_pad), lambda i, ids_ref: (i, 0)),
        scratch_shapes=[pltpu.VMEM((TB, D), jnp.float32)],
    )

    flops = 2 * B_pad * D * C_pad + B_pad * L * D
    bytes_accessed = (B_pad * L * 4
                      + V * D * emb_table.dtype.itemsize
                      + D * C_pad * 4
                      + B_pad * C_pad * 4)

    out = pl.pallas_call(
        kernel,
        out_shape=jax.ShapeDtypeStruct((B_pad, C_pad), jnp.float32),
        grid_spec=grid_spec,
        compiler_params=pltpu.CompilerParams(
            dimension_semantics=("parallel",)),   # batch-tile axis megacore-shardable
        cost_estimate=pl.CostEstimate(
            flops=int(flops), transcendentals=0,
            bytes_accessed=int(bytes_accessed)),
    )(ids_flat, emb_table, w_pad, b_pad)

    return out[:B, :C]


if __name__ == "__main__":
    # Small synthetic shapes consistent with the module.
    vocab_size = 128
    embed_dim = 64
    num_class = 4
    batch = 2
    seq_len = 8            # max_length analog, kept small

    key = jax.random.PRNGKey(0)
    k_ids, k_emb, k_w, k_b = jax.random.split(key, 4)

    ids = jax.random.randint(k_ids, (batch, seq_len), 0, vocab_size,
                             dtype=jnp.int32)
    # nn.Embedding default init: N(0, 1)
    emb_table = jax.random.normal(k_emb, (vocab_size, embed_dim),
                                  dtype=jnp.float32)
    # nn.Linear default init: U(-1/sqrt(in), 1/sqrt(in))
    bound = 1.0 / (embed_dim ** 0.5)
    fc_weight = jax.random.uniform(k_w, (num_class, embed_dim), jnp.float32,
                                   -bound, bound)
    fc_bias = jax.random.uniform(k_b, (num_class,), jnp.float32, -bound, bound)

    out = text_classification_forward(ids, emb_table, fc_weight, fc_bias)
    out = jax.block_until_ready(out)

    # Pure-JAX reference (embedding -> mean pool over full L -> linear),
    # matching torch.mean(embedded, dim=1) which includes pad tokens.
    ref = jnp.mean(emb_table[ids], axis=1) @ fc_weight.T + fc_bias
    assert out.shape == (batch, num_class)
    assert jnp.allclose(out, ref, atol=1e-4, rtol=1e-4)

    print("KERNEL_OK")
</pallas_src>

<mosaic_0001>
module attributes {stable_mosaic.version = 11 : i64} {
  func.func @_text_cls_kernel(%arg0: i32, %arg1: memref<64xi32, #tpu.memory_space<smem>>, %arg2: memref<128x64xf32, #tpu.memory_space<vmem>>, %arg3: memref<64x128xf32, #tpu.memory_space<vmem>>, %arg4: memref<1x128xf32, #tpu.memory_space<vmem>>, %arg5: memref<8x128xf32, #tpu.memory_space<vmem>>, %arg6: memref<8x64xf32, #tpu.memory_space<vmem>>) attributes {dimension_semantics = [#tpu.dimension_semantics<parallel>], iteration_bounds = array<i64: 1>, scalar_prefetch = 1 : i64, scratch_operands = 1 : i64, tpu.core_type = #tpu.core_type<tc>, window_params = [{pipeline_mode = #tpu.pipeline_mode<synchronous>, transform_indices = @transform_0, window_bounds = array<i64: 128, 64>}, {pipeline_mode = #tpu.pipeline_mode<synchronous>, transform_indices = @transform_1, window_bounds = array<i64: 64, 128>}, {pipeline_mode = #tpu.pipeline_mode<synchronous>, transform_indices = @transform_2, window_bounds = array<i64: 1, 128>}, {transform_indices = @transform_3, window_bounds = array<i64: 8, 128>}]} {
    %c64_i32 = arith.constant 64 : i32
    %0 = arith.muli %arg0, %c64_i32 : i32
    %c0_i32 = arith.constant 0 : i32
    %c8_i32 = arith.constant 8 : i32
    %1 = arith.addi %c0_i32, %c8_i32 : i32
    %c1_i32 = arith.constant 1 : i32
    scf.for %arg7 = %c0_i32 to %1 step %c1_i32  : i32 {
      %c8_i32_8 = arith.constant 8 : i32
      %9 = arith.muli %arg7, %c8_i32_8 : i32
      %10 = arith.addi %0, %9 : i32
      %cst_9 = arith.constant 0.000000e+00 : f32
      %11 = vector.broadcast %cst_9 : f32 to vector<1x64xf32>
      %c0_i32_10 = arith.constant 0 : i32
      %c8_i32_11 = arith.constant 8 : i32
      %12 = arith.addi %c0_i32_10, %c8_i32_11 : i32
      %c1_i32_12 = arith.constant 1 : i32
      %13 = scf.for %arg8 = %c0_i32_10 to %12 step %c1_i32_12 iter_args(%arg9 = %11) -> (vector<1x64xf32>)  : i32 {
        %18 = arith.addi %10, %arg8 : i32
        %19 = arith.index_cast %18 : i32 to index
        %20 = memref.load %arg1[%19] : memref<64xi32, #tpu.memory_space<smem>>
        %21 = arith.index_cast %20 : i32 to index
        %c0_16 = arith.constant 0 : index
        %22 = vector.load %arg2[%21, %c0_16] : memref<128x64xf32, #tpu.memory_space<vmem>>, vector<1x64xf32>
        %23 = arith.addf %arg9, %22 : vector<1x64xf32>
        scf.yield %23 : vector<1x64xf32>
      }
      %c8_i32_13 = arith.constant 8 : i32
      %cst_14 = arith.constant 1.250000e-01 : f32
      %14 = vector.broadcast %cst_14 : f32 to vector<1x64xf32>
      %15 = arith.mulf %13, %14 : vector<1x64xf32>
      %16 = arith.index_cast %arg7 : i32 to index
      %c0_15 = arith.constant 0 : index
      %17 = vector.load %arg6[%16, %c0_15] : memref<8x64xf32, #tpu.memory_space<vmem>>, vector<1x64xf32>
      tpu.vector_store %arg6[%16, %c0_15], %15 {strides = array<i32>} : memref<8x64xf32, #tpu.memory_space<vmem>>, vector<1x64xf32>,
    }
    %c8_i32_0 = arith.constant 8 : i32
    %c0 = arith.constant 0 : index
    %c0_1 = arith.constant 0 : index
    %2 = vector.load %arg6[%c0, %c0_1] : memref<8x64xf32, #tpu.memory_space<vmem>>, vector<8x64xf32>
    %c0_2 = arith.constant 0 : index
    %c0_3 = arith.constant 0 : index
    %3 = vector.load %arg3[%c0_2, %c0_3] : memref<64x128xf32, #tpu.memory_space<vmem>>, vector<64x128xf32>
    %cst = arith.constant dense<0.000000e+00> : vector<8x128xf32>
    %4 = tpu.matmul %2, %3, %cst {dimension_numbers = #tpu.dot_dimension_numbers<[1], [0], [0], [1], [0, 0, 1, 1], [], []>} : vector<8x64xf32>, vector<64x128xf32>, vector<8x128xf32> -> vector<8x128xf32>
    %c0_4 = arith.constant 0 : index
    %c0_5 = arith.constant 0 : index
    %5 = vector.load %arg4[%c0_4, %c0_5] : memref<1x128xf32, #tpu.memory_space<vmem>>, vector<1x128xf32>
    %6 = vector.broadcast %5 : vector<1x128xf32> to vector<8x128xf32>
    %7 = arith.addf %4, %6 : vector<8x128xf32>
    %c0_6 = arith.constant 0 : index
    %c0_7 = arith.constant 0 : index
    %8 = vector.load %arg5[%c0_6, %c0_7] : memref<8x128xf32, #tpu.memory_space<vmem>>, vector<8x128xf32>
    tpu.vector_store %arg5[%c0_6, %c0_7], %7 {strides = array<i32>} : memref<8x128xf32, #tpu.memory_space<vmem>>, vector<8x128xf32>,
    return
  }
  func.func @transform_0(%arg0: i32, %arg1: memref<64xi32, #tpu.memory_space<smem>>) -> (i32, i32) {
    %c0_i32 = arith.constant 0 : i32
    %c0_i32_0 = arith.constant 0 : i32
    %c0_i32_1 = arith.constant 0 : i32
    return %c0_i32, %c0_i32_0 : i32, i32
  }
  func.func @transform_1(%arg0: i32, %arg1: memref<64xi32, #tpu.memory_space<smem>>) -> (i32, i32) {
    %c0_i32 = arith.constant 0 : i32
    %c0_i32_0 = arith.constant 0 : i32
    %c0_i32_1 = arith.constant 0 : i32
    return %c0_i32, %c0_i32_0 : i32, i32
  }
  func.func @transform_2(%arg0: i32, %arg1: memref<64xi32, #tpu.memory_space<smem>>) -> (i32, i32) {
    %c0_i32 = arith.constant 0 : i32
    %c0_i32_0 = arith.constant 0 : i32
    %c0_i32_1 = arith.constant 0 : i32
    return %c0_i32, %c0_i32_0 : i32, i32
  }
  func.func @transform_3(%arg0: i32, %arg1: memref<64xi32, #tpu.memory_space<smem>>) -> (i32, i32) {
    %c0_i32 = arith.constant 0 : i32
    %c0_i32_0 = arith.constant 0 : i32
    return %arg0, %c0_i32 : i32, i32
  }
}

</mosaic_0001>

<llo_original>
// kernel: tpu_custom_call.1
$region0: #{tpu_custom_call.1}
  #allocation0 [shape = 'u32[]', space=smem, size = 0x4, offset = 0x4, fixed_abs, tag = 'smem constant byte address 0x4 - core index']
  #allocation1 [shape = 'u32[144,128]{1,0:T(1,128)}', space=vmem, size = 0x12000, scoped, tag = 'internal scratch']
  #allocation2 [shape = 'f32[8,64]{1,0:T(8,128)}', space=vmem, size = 0x1000, scoped, tag = 'scratch operand']
  #allocation3 [shape = 's32[1]{0}', space=sflag, size = 0x4, scoped, tag = 'scoped memory for tpu_custom_call.1']
  #allocation4 [shape = 'u8[512]{0}', space=smem, size = 0x200, scoped, tag = 'prefetched SMEM operand 0']
  %s0 = inlined_call_operand.vmem [shape: s32[64], index: 0, kind: input, shape index: {}]
  %s1 = inlined_call_operand.vmem [shape: f32[128,64], index: 1, kind: input, shape index: {}]
  %s2 = inlined_call_operand.vmem [shape: f32[64,128], index: 2, kind: input, shape index: {}]
  %s3 = inlined_call_operand.vmem [shape: f32[1,128], index: 3, kind: input, shape index: {}]
  %s4 = inlined_call_operand.hbm [shape: f32[8,128], index: 4, kind: output, shape index: {}]
  %s5 = sld [smem:[#allocation0]]
  $region36: #{tpu_custom_call.1} parent=0
    _
  %s7 = ssub.s32 1, %s5
  %s8 = scalar_select 0, %s7, %s5
  %s9 = sshll.u32 %s0, 4
  %s10 = int_to_ptr.vmem [resolvable:$true] %s9
  %12 = dma.vmem_to_smem %s10, 16, [#allocation4], [#allocation3]
  %13 = dma.done [#allocation3], 16
  %14 = sfence
  $region1: #{tpu_custom_call.1} parent=0
    #allocation5 [shape = 'u8[4096]{0}', space=vmem, size = 0x1000, scoped, tag = 'output window, operand 0, single buffered']
    #allocation6 [shape = 's32[1]{0}', space=sflag, size = 0x4, scoped, tag = 'scoped memory for tpu_custom_call.1']
    %15 = vsyncpa [#allocation6], 0
    // Predicated region
    $region2: #{tpu_custom_call.1} parent=1 // pred_check
      _
    $region3: #{tpu_custom_call.1} parent=1 // pred_check_branch
      %17 = sbr.rel (0) target = $region5
    $region4: #{tpu_custom_call.1} parent=1 // pred_region
      _
    $region5: #{tpu_custom_call.1} parent=1 // pred_fallthru
      _
    // Predicated region
    $region6: #{tpu_custom_call.1} parent=1 // pred_check
      _
    $region7: #{tpu_custom_call.1} parent=1 // pred_check_branch
      %19 = sbr.rel (0) target = $region9
    $region8: #{tpu_custom_call.1} parent=1 // pred_region
      _
    $region9: #{tpu_custom_call.1} parent=1 // pred_fallthru
      _
    // Predicated region
    $region10: #{tpu_custom_call.1} parent=1 // pred_check
      _
    $region11: #{tpu_custom_call.1} parent=1 // pred_check_branch
      %21 = sbr.rel (0) target = $region13
    $region12: #{tpu_custom_call.1} parent=1 // pred_region
      _
    $region13: #{tpu_custom_call.1} parent=1 // pred_fallthru
      _
    %s22 = smul.u32 0, 64
    loop: start=0, step=1, limit=8
    $region14: #{tpu_custom_call.1} parent=1 // loop_pre_header
      _
    $region15: #{tpu_custom_call.1} parent=1 // loop_header
      %s24 = sphi 0, %s28
      %p25 = scmp.ge.s32.totalorder %s24, 8
    $region16: #{tpu_custom_call.1} parent=1 // loop_header_branch
      %27 = sbr.rel (%p25) target = $region20
    $region17: #{tpu_custom_call.1} parent=1 // loop_body
      %s29 = smul.u32 %s24, 8
      %s30 = sadd.s32 %s22, %s29
      loop: start=0, step=1, limit=8
      $region21: #{tpu_custom_call.1} parent=17 // loop_pre_header
        _
      $region22: #{tpu_custom_call.1} parent=17 // loop_header
        %s32 = sphi 0, %s36
        %p33 = scmp.ge.s32.totalorder %s32, 8
        %v37 = vphi 0.0, %v42
      $region23: #{tpu_custom_call.1} parent=17 // loop_header_branch
        %35 = sbr.rel (%p33) target = $region27
      $region24: #{tpu_custom_call.1} parent=17 // loop_body
        %s38 = sadd.s32 %s30, %s32
        %s39 = sld [smem:[#allocation4 + %s38]]
        %s40 = scalar_lea.vmem %s1, %s39
        %v41 = vld [vmem:[%s40] sm:$0x1]
        %v42 = vadd.f32 %v37, %v41
      $region25: #{tpu_custom_call.1} parent=17 // loop_footer
        %s36 = sadd.s32 1, %s32
      $region26: #{tpu_custom_call.1} parent=17 // loop_footer_branch
        %31 = sbr.rel target = $region22
      $region27: #{tpu_custom_call.1} parent=17 // loop_exit
        _
      %v43 = vmul.f32 %v37, 0.125
      %s44 = scalar_lea.vmem [#allocation2], %s24
      %vm45 = vcmask 516096
      %46 = vst.msk [vmem:[%s44] sm:$0x1] %vm45, %v43
    $region18: #{tpu_custom_call.1} parent=1 // loop_footer
      %s28 = sadd.s32 1, %s24
    $region19: #{tpu_custom_call.1} parent=1 // loop_footer_branch
      %23 = sbr.rel target = $region15
    $region20: #{tpu_custom_call.1} parent=1 // loop_exit
      _
    %v47 = vld [vmem:[#allocation2] sm:$0xff]
    %v48 = vld [vmem:[%s2] sm:$0xff]
    %v49 = vld [vmem:[%s2 + $0x8] sm:$0xff]
    %v50 = vld [vmem:[%s2 + $0x10] sm:$0xff]
    %v51 = vld [vmem:[%s2 + $0x18] sm:$0xff]
    %v52 = vld [vmem:[%s2 + $0x20] sm:$0xff]
    %v53 = vld [vmem:[%s2 + $0x28] sm:$0xff]
    %v54 = vld [vmem:[%s2 + $0x30] sm:$0xff]
    %v55 = vld [vmem:[%s2 + $0x38] sm:$0xff]
    %v56 = vld [vmem:[%s3] sm:$0x1]
    %v58 = vlaneseq
    %v59 = vshrl.u32 %v58, 7
    %v60 = vsub.s32 0, %v59
    %v61 = vrot.slane %v56, %v60
    %vm63 = vcmask 523264
    %v65 = vsel %vm63, %v47, 0
    %67 = vmatprep.subr.mxu0 0.0
    %68 = vmatpush1.msra.mxu0 0.0
    %69 = vmatprep.subr.mxu0 0.0
    %70 = vmatpush1.msra.mxu0 0.0
    %71 = vmatprep.subr.mxu0 0.0
    %72 = vmatpush1.msra.mxu0 0.0
    %73 = vmatprep.subr.mxu0 0.0
    %74 = vmatpush1.msra.mxu0 0.0
    %75 = vmatprep.subr.mxu0 0.0
    %76 = vmatpush1.msra.mxu0 0.0
    %77 = vmatprep.subr.mxu0 0.0
    %78 = vmatpush1.msra.mxu0 0.0
    %79 = vmatprep.subr.mxu0 0.0
    %80 = vmatpush1.msra.mxu0 0.0
    %81 = vmatprep.subr.mxu0 0.0
    %82 = vmatpush1.msra.mxu0 0.0
    %83 = vmatprep.subr.mxu0 0.0
    %84 = vmatpush1.msra.mxu0 %v55
    %85 = vmatprep.subr.mxu0 0.0
    %86 = vmatpush1.msra.mxu0 %v54
    %87 = vmatprep.subr.mxu0 0.0
    %88 = vmatpush1.msra.mxu0 %v53
    %89 = vmatprep.subr.mxu0 0.0
    %90 = vmatpush1.msra.mxu0 %v52
    %91 = vmatprep.subr.mxu0 0.0
    %92 = vmatpush1.msra.mxu0 %v51
    %93 = vmatprep.subr.mxu0 0.0
    %94 = vmatpush1.msra.mxu0 %v50
    %95 = vmatprep.subr.mxu0 0.0
    %96 = vmatpush1.msra.mxu0 %v49
    %97 = vmatprep.subr.mxu0 0.0
    %98 = vmatpush1.msra.mxu0 %v48
    %99 = vmatprep.subr.mxu0 0.0
    %100 = vmatpush2.msra.mxu0 0.0
    %101 = vmatprep.subr.mxu0 0.0
    %102 = vmatpush2.msra.mxu0 0.0
    %103 = vmatprep.subr.mxu0 0.0
    %104 = vmatpush2.msra.mxu0 0.0
    %105 = vmatprep.subr.mxu0 0.0
    %106 = vmatpush2.msra.mxu0 0.0
    %107 = vmatprep.subr.mxu0 0.0
    %108 = vmatpush2.msra.mxu0 0.0
    %109 = vmatprep.subr.mxu0 0.0
    %110 = vmatpush2.msra.mxu0 0.0
    %111 = vmatprep.subr.mxu0 0.0
    %112 = vmatpush2.msra.mxu0 0.0
    %113 = vmatprep.subr.mxu0 0.0
    %114 = vmatpush2.msra.mxu0 0.0
    %115 = vmatprep.subr.mxu0 0.0
    %116 = vmatpush2.msra.mxu0 0.0
    %117 = vmatprep.subr.mxu0 0.0
    %118 = vmatpush2.msra.mxu0 0.0
    %119 = vmatprep.subr.mxu0 0.0
    %120 = vmatpush2.msra.mxu0 0.0
    %121 = vmatprep.subr.mxu0 0.0
    %122 = vmatpush2.msra.mxu0 0.0
    %123 = vmatprep.subr.mxu0 0.0
    %124 = vmatpush2.msra.mxu0 0.0
    %125 = vmatprep.subr.mxu0 0.0
    %126 = vmatpush2.msra.mxu0 0.0
    %127 = vmatprep.subr.mxu0 0.0
    %128 = vmatpush2.msra.mxu0 0.0
    %129 = vmatprep.subr.mxu0 0.0
    %130 = vmatpush2.msra.mxu0 0.0
    %131 = vmatprep.mubr.f32.mxu0 0.0
    %132 = vmatmul.mubr.f32.gmra.mxu0 %v65
    %v133 = vpop.f32.mrf.mxu0
    %v134 = vadd.f32 %v61, %v133
    %v135 = vpop.f32.mrf.mxu0
    %136 = vdwg.mxu0
    %137 = vst [vmem:[#allocation5] sm:$0xff] %v134
    // Predicated region
    $region28: #{tpu_custom_call.1} parent=1 // pred_check
      _
    $region29: #{tpu_custom_call.1} parent=1 // pred_check_branch
      %139 = sbr.rel (0) target = $region31
    $region30: #{tpu_custom_call.1} parent=1 // pred_region
      %s141 = ssub.s32 128, 128
      %142 = vsyncadd [#allocation6], %s141
      %s144 = sshll.u32 [#allocation5], 4
      %s145 = int_to_ptr.vmem [resolvable:$true] %s144
      %147 = dma.vmem_to_hbm [thread:$0]  %s145, 128, %s4, [#allocation6]
    $region31: #{tpu_custom_call.1} parent=1 // pred_fallthru
      _
    // Predicated region
    $region32: #{tpu_custom_call.1} parent=1 // pred_check
      _
    $region33: #{tpu_custom_call.1} parent=1 // pred_check_branch
      %149 = sbr.rel (0) target = $region35
    $region34: #{tpu_custom_call.1} parent=1 // pred_region
      %150 = dma.done [#allocation6], 128
    $region35: #{tpu_custom_call.1} parent=1 // pred_fallthru
      _
    %151 = vsyncpa [#allocation6], 1

</llo_original>
